<compile_context>
chip_gen: v6e
topology: v6e:2x2x1
jax: 0.10.0
libtpu: 0.0.40
codegen_flags: <defaults>
</compile_context>

<pallas_src>
import jax
import jax.numpy as jnp
from jax.experimental import pallas as pl
from jax.experimental.pallas import tpu as pltpu


# ----------------------------------------------------------------------------
# Fused 2-layer GCN forward kernel.
#   a_ref  : [N, N]        bf16  normalized adjacency
#   x_ref  : [N, F_in]     bf16  node features
#   w0_ref : [F_in, H_p]   bf16  layer-0 weight (hidden dim zero-padded)
#   b0_ref : [1, H_p]      f32   layer-0 bias   (zero-padded)
#   w1_ref : [H_p, F_out]  bf16  layer-1 weight (padded rows are zero)
#   b1_ref : [1, F_out]    f32   layer-1 bias
#   o_ref  : [N, F_out]    f32   output embeddings
#   h_ref  : [N, H_p]      bf16  VMEM scratch for the intermediate H
# ----------------------------------------------------------------------------
def fused_gcn2_kernel(a_ref, x_ref, w0_ref, b0_ref, w1_ref, b1_ref,
                      o_ref, h_ref):
    # ----- layer 0: H = relu(A @ (X @ W0) + b0) -----
    xw = jnp.dot(x_ref[...], w0_ref[...], preferred_element_type=jnp.float32)
    h = jnp.dot(a_ref[...], xw.astype(jnp.bfloat16),
                preferred_element_type=jnp.float32)
    h = jnp.maximum(h + b0_ref[...], 0.0)            # bias + ReLU in f32
    h_ref[...] = h.astype(jnp.bfloat16)              # stays resident in VMEM

    # ----- layer 1: out = A @ (H @ W1) + b1 -----
    hw = jnp.dot(h_ref[...], w1_ref[...], preferred_element_type=jnp.float32)
    y = jnp.dot(a_ref[...], hw.astype(jnp.bfloat16),
                preferred_element_type=jnp.float32)
    o_ref[...] = (y + b1_ref[...]).astype(o_ref.dtype)


def _round_up(v, m):
    return (v + m - 1) // m * m


def net_forward(params, x, a_norm):
    """Net.forward, mode='unsupervised', loss != RNWE, num_layers=2, dropout=0."""
    n, f_in = x.shape
    hidden = params["w0"].shape[1]
    f_out = params["w1"].shape[1]

    # Lane-dense hidden dim (exact zero padding, see module docstring).
    hidden_p = _round_up(hidden, 128)
    w0 = jnp.zeros((f_in, hidden_p), jnp.float32).at[:, :hidden].set(params["w0"])
    b0 = jnp.zeros((1, hidden_p), jnp.float32).at[:, :hidden].set(params["b0"])
    w1 = jnp.zeros((hidden_p, f_out), jnp.float32).at[:hidden, :].set(params["w1"])
    b1 = params["b1"].reshape(1, f_out)

    # bf16 matmul operands; f32 accumulation happens inside the kernel.
    a_bf = a_norm.astype(jnp.bfloat16)
    x_bf = x.astype(jnp.bfloat16)
    w0_bf = w0.astype(jnp.bfloat16)
    w1_bf = w1.astype(jnp.bfloat16)

    vmem = lambda: pl.BlockSpec(memory_space=pltpu.MemorySpace.VMEM)
    return pl.pallas_call(
        fused_gcn2_kernel,
        out_shape=jax.ShapeDtypeStruct((n, f_out), jnp.float32),
        in_specs=[vmem() for _ in range(6)],
        out_specs=vmem(),
        scratch_shapes=[pltpu.VMEM((n, hidden_p), jnp.bfloat16)],
    )(a_bf, x_bf, w0_bf, b0, w1_bf, b1)


# ----------------------------------------------------------------------------
# Parameter setup + GCN normalization glue (plain JAX)
# ----------------------------------------------------------------------------
def glorot(key, shape):
    fan_in, fan_out = shape
    limit = jnp.sqrt(6.0 / (fan_in + fan_out))
    return jax.random.uniform(key, shape, jnp.float32, -limit, limit)


def make_params(key, num_features, hidden_layer, out_layer):
    k1, k2 = jax.random.split(key)
    return {
        "w0": glorot(k1, (num_features, hidden_layer)),
        "b0": jnp.zeros((hidden_layer,), jnp.float32),
        "w1": glorot(k2, (hidden_layer, out_layer)),
        "b1": jnp.zeros((out_layer,), jnp.float32),
    }


def gcn_normalize(adj):
    """A_hat = A + I ; D^-1/2 A_hat D^-1/2 (symmetric GCN normalization)."""
    n = adj.shape[0]
    a_hat = adj + jnp.eye(n, dtype=adj.dtype)
    deg = a_hat.sum(axis=1)
    d_inv_sqrt = jnp.where(deg > 0, 1.0 / jnp.sqrt(deg), 0.0)
    return a_hat * d_inv_sqrt[:, None] * d_inv_sqrt[None, :]


# ----------------------------------------------------------------------------
# Main
# ----------------------------------------------------------------------------
if __name__ == "__main__":
    key = jax.random.PRNGKey(0)
    k_x, k_a, k_p = jax.random.split(key, 3)

    N = 128            # number of graph nodes
    NUM_FEATURES = 32  # dataset.x.shape[1]
    HIDDEN = 64        # hidden_layer default
    OUT = 128          # out_layer default

    # deterministic node features and random symmetric adjacency
    x = jax.random.normal(k_x, (N, NUM_FEATURES), jnp.float32)
    rand = jax.random.uniform(k_a, (N, N))
    adj = (rand < 0.05).astype(jnp.float32)
    adj = jnp.maximum(adj, adj.T)            # undirected
    adj = adj * (1.0 - jnp.eye(N))           # no self loops (added in normalization)
    a_norm = gcn_normalize(adj)

    params = make_params(k_p, NUM_FEATURES, HIDDEN, OUT)

    out = net_forward(params, x, a_norm)
    out = jax.block_until_ready(out)

    # sanity check against a pure-f32 JAX reference of the same math
    # (bf16 matmul operands with f32 accumulation => loosened tolerance)
    h_ref = jnp.maximum(a_norm @ (x @ params["w0"]) + params["b0"], 0.0)
    out_ref = a_norm @ (h_ref @ params["w1"]) + params["b1"]
    assert out.shape == (N, OUT)
    max_err = float(jnp.max(jnp.abs(out - out_ref)))
    assert jnp.allclose(out, out_ref, atol=5e-2, rtol=5e-2), max_err

    print("KERNEL_OK")
</pallas_src>

<mosaic_0001>
module attributes {stable_mosaic.version = 11 : i64} {
  func.func @fused_gcn2_kernel(%arg0: memref<128x128xbf16, #tpu.memory_space<vmem>>, %arg1: memref<128x32xbf16, #tpu.memory_space<vmem>>, %arg2: memref<32x128xbf16, #tpu.memory_space<vmem>>, %arg3: memref<1x128xf32, #tpu.memory_space<vmem>>, %arg4: memref<128x128xbf16, #tpu.memory_space<vmem>>, %arg5: memref<1x128xf32, #tpu.memory_space<vmem>>, %arg6: memref<128x128xf32, #tpu.memory_space<vmem>>, %arg7: memref<128x128xbf16, #tpu.memory_space<vmem>>) attributes {dimension_semantics = [], scalar_prefetch = 0 : i64, scratch_operands = 1 : i64, tpu.core_type = #tpu.core_type<tc>} {
    %c0 = arith.constant 0 : index
    %c0_0 = arith.constant 0 : index
    %0 = vector.load %arg1[%c0, %c0_0] : memref<128x32xbf16, #tpu.memory_space<vmem>>, vector<128x32xbf16>
    %c0_1 = arith.constant 0 : index
    %c0_2 = arith.constant 0 : index
    %1 = vector.load %arg2[%c0_1, %c0_2] : memref<32x128xbf16, #tpu.memory_space<vmem>>, vector<32x128xbf16>
    %cst = arith.constant dense<0.000000e+00> : vector<128x128xf32>
    %2 = tpu.matmul %0, %1, %cst {dimension_numbers = #tpu.dot_dimension_numbers<[1], [0], [0], [1], [0, 0, 1, 1], [], []>} : vector<128x32xbf16>, vector<32x128xbf16>, vector<128x128xf32> -> vector<128x128xf32>
    %c0_3 = arith.constant 0 : index
    %c0_4 = arith.constant 0 : index
    %3 = vector.load %arg0[%c0_3, %c0_4] : memref<128x128xbf16, #tpu.memory_space<vmem>>, vector<128x128xbf16>
    %4 = arith.truncf %2 : vector<128x128xf32> to vector<128x128xbf16>
    %cst_5 = arith.constant dense<0.000000e+00> : vector<128x128xf32>
    %5 = tpu.matmul %3, %4, %cst_5 {dimension_numbers = #tpu.dot_dimension_numbers<[1], [0], [0], [1], [0, 0, 1, 1], [], []>} : vector<128x128xbf16>, vector<128x128xbf16>, vector<128x128xf32> -> vector<128x128xf32>
    %c0_6 = arith.constant 0 : index
    %c0_7 = arith.constant 0 : index
    %6 = vector.load %arg3[%c0_6, %c0_7] : memref<1x128xf32, #tpu.memory_space<vmem>>, vector<1x128xf32>
    %7 = vector.broadcast %6 : vector<1x128xf32> to vector<128x128xf32>
    %8 = arith.addf %5, %7 : vector<128x128xf32>
    %cst_8 = arith.constant 0.000000e+00 : f32
    %9 = vector.broadcast %cst_8 : f32 to vector<128x128xf32>
    %10 = arith.maximumf %8, %9 : vector<128x128xf32>
    %11 = arith.truncf %10 : vector<128x128xf32> to vector<128x128xbf16>
    %c0_9 = arith.constant 0 : index
    %c0_10 = arith.constant 0 : index
    %12 = vector.load %arg7[%c0_9, %c0_10] : memref<128x128xbf16, #tpu.memory_space<vmem>>, vector<128x128xbf16>
    tpu.vector_store %arg7[%c0_9, %c0_10], %11 {strides = array<i32>} : memref<128x128xbf16, #tpu.memory_space<vmem>>, vector<128x128xbf16>,
    %c0_11 = arith.constant 0 : index
    %c0_12 = arith.constant 0 : index
    %13 = vector.load %arg7[%c0_11, %c0_12] : memref<128x128xbf16, #tpu.memory_space<vmem>>, vector<128x128xbf16>
    %c0_13 = arith.constant 0 : index
    %c0_14 = arith.constant 0 : index
    %14 = vector.load %arg4[%c0_13, %c0_14] : memref<128x128xbf16, #tpu.memory_space<vmem>>, vector<128x128xbf16>
    %cst_15 = arith.constant dense<0.000000e+00> : vector<128x128xf32>
    %15 = tpu.matmul %13, %14, %cst_15 {dimension_numbers = #tpu.dot_dimension_numbers<[1], [0], [0], [1], [0, 0, 1, 1], [], []>} : vector<128x128xbf16>, vector<128x128xbf16>, vector<128x128xf32> -> vector<128x128xf32>
    %c0_16 = arith.constant 0 : index
    %c0_17 = arith.constant 0 : index
    %16 = vector.load %arg0[%c0_16, %c0_17] : memref<128x128xbf16, #tpu.memory_space<vmem>>, vector<128x128xbf16>
    %17 = arith.truncf %15 : vector<128x128xf32> to vector<128x128xbf16>
    %cst_18 = arith.constant dense<0.000000e+00> : vector<128x128xf32>
    %18 = tpu.matmul %16, %17, %cst_18 {dimension_numbers = #tpu.dot_dimension_numbers<[1], [0], [0], [1], [0, 0, 1, 1], [], []>} : vector<128x128xbf16>, vector<128x128xbf16>, vector<128x128xf32> -> vector<128x128xf32>
    %c0_19 = arith.constant 0 : index
    %c0_20 = arith.constant 0 : index
    %19 = vector.load %arg5[%c0_19, %c0_20] : memref<1x128xf32, #tpu.memory_space<vmem>>, vector<1x128xf32>
    %20 = vector.broadcast %19 : vector<1x128xf32> to vector<128x128xf32>
    %21 = arith.addf %18, %20 : vector<128x128xf32>
    %c0_21 = arith.constant 0 : index
    %c0_22 = arith.constant 0 : index
    %22 = vector.load %arg6[%c0_21, %c0_22] : memref<128x128xf32, #tpu.memory_space<vmem>>, vector<128x128xf32>
    tpu.vector_store %arg6[%c0_21, %c0_22], %21 {strides = array<i32>} : memref<128x128xf32, #tpu.memory_space<vmem>>, vector<128x128xf32>,
    return
  }
}

</mosaic_0001>

<llo_original>
// kernel: tpu_custom_call.1
$region0: #{tpu_custom_call.1}
  #allocation0 [shape = 'u32[]', space=smem, size = 0x4, offset = 0x4, fixed_abs, tag = 'smem constant byte address 0x4 - core index']
  #allocation1 [shape = 'u32[144,128]{1,0:T(1,128)}', space=vmem, size = 0x12000, scoped, tag = 'internal scratch']
  #allocation2 [shape = 'bf16[128,128]{1,0:T(8,128)(2,1)}', space=vmem, size = 0x8000, scoped, tag = 'scratch operand']
  %s0 = inlined_call_operand.vmem [shape: bf16[128,128], index: 0, kind: input, shape index: {}]
  %s1 = inlined_call_operand.vmem [shape: bf16[128,32], index: 1, kind: input, shape index: {}]
  %s2 = inlined_call_operand.vmem [shape: bf16[32,128], index: 2, kind: input, shape index: {}]
  %s3 = inlined_call_operand.vmem [shape: f32[1,128], index: 3, kind: input, shape index: {}]
  %s4 = inlined_call_operand.hbm [shape: bf16[128,128], index: 4, kind: input, shape index: {}]
  %s5 = inlined_call_operand.vmem [shape: f32[1,128], index: 5, kind: input, shape index: {}]
  %s6 = inlined_call_operand.hbm [shape: f32[128,128], index: 6, kind: output, shape index: {}]
  %s7 = sld [smem:[#allocation0]]
  $region38: #{tpu_custom_call.1} parent=0
    _
  %s9 = ssub.s32 1, %s7
  %s10 = scalar_select 0, %s9, %s7
  $region1: #{tpu_custom_call.1} parent=0
    #allocation3 [shape = 'u8[32768]{0}', space=vmem, size = 0x8000, scoped, tag = 'input window, operand 4, single buffered']
    #allocation4 [shape = 's32[1]{0}', space=sflag, size = 0x4, scoped, tag = 'scoped memory for tpu_custom_call.1']
    #allocation5 [shape = 's32[1]{0}', space=sflag, size = 0x4, scoped, tag = 'scoped memory for tpu_custom_call.1']
    #allocation6 [shape = 'u8[65536]{0}', space=vmem, size = 0x10000, scoped, tag = 'output window, operand 0, single buffered']
    %11 = vsyncpa [#allocation4], 0
    %12 = vsyncpa [#allocation5], 0
    // Predicated region
    $region2: #{tpu_custom_call.1} parent=1 // pred_check
      _
    $region3: #{tpu_custom_call.1} parent=1 // pred_check_branch
      %14 = sbr.rel (0) target = $region5
    $region4: #{tpu_custom_call.1} parent=1 // pred_region
      _
    $region5: #{tpu_custom_call.1} parent=1 // pred_fallthru
      _
    // Predicated region
    $region6: #{tpu_custom_call.1} parent=1 // pred_check
      _
    $region7: #{tpu_custom_call.1} parent=1 // pred_check_branch
      %16 = sbr.rel (0) target = $region9
    $region8: #{tpu_custom_call.1} parent=1 // pred_region
      _
    $region9: #{tpu_custom_call.1} parent=1 // pred_fallthru
      _
    // Predicated region
    $region10: #{tpu_custom_call.1} parent=1 // pred_check
      _
    $region11: #{tpu_custom_call.1} parent=1 // pred_check_branch
      %18 = sbr.rel (0) target = $region13
    $region12: #{tpu_custom_call.1} parent=1 // pred_region
      _
    $region13: #{tpu_custom_call.1} parent=1 // pred_fallthru
      _
    // Predicated region
    $region14: #{tpu_custom_call.1} parent=1 // pred_check
      _
    $region15: #{tpu_custom_call.1} parent=1 // pred_check_branch
      %20 = sbr.rel (0) target = $region17
    $region16: #{tpu_custom_call.1} parent=1 // pred_region
      _
    $region17: #{tpu_custom_call.1} parent=1 // pred_fallthru
      _
    // Predicated region
    $region18: #{tpu_custom_call.1} parent=1 // pred_check
      _
    $region19: #{tpu_custom_call.1} parent=1 // pred_check_branch
      %22 = sbr.rel (0) target = $region21
    $region20: #{tpu_custom_call.1} parent=1 // pred_region
      %s24 = ssub.s32 1024, 1024
      %25 = vsyncadd [#allocation4], %s24
      %s26 = sshll.u32 [#allocation3], 4
      %s27 = int_to_ptr.vmem [resolvable:$true] %s26
      %32 = dma.hbm_to_vmem [thread:$0]  %s4, 1024, %s27, [#allocation4], 64, 64, 4
    $region21: #{tpu_custom_call.1} parent=1 // pred_fallthru
      _
    // Predicated region
    $region22: #{tpu_custom_call.1} parent=1 // pred_check
      _
    $region23: #{tpu_custom_call.1} parent=1 // pred_check_branch
      %34 = sbr.rel (0) target = $region25
    $region24: #{tpu_custom_call.1} parent=1 // pred_region
      _
    $region25: #{tpu_custom_call.1} parent=1 // pred_fallthru
      _
    // Predicated region
    $region26: #{tpu_custom_call.1} parent=1 // pred_check
      _
    $region27: #{tpu_custom_call.1} parent=1 // pred_check_branch
      %36 = sbr.rel (0) target = $region29
    $region28: #{tpu_custom_call.1} parent=1 // pred_region
      %37 = dma.done [#allocation4], 1024
    $region29: #{tpu_custom_call.1} parent=1 // pred_fallthru
      _
    %v39 = vld [vmem:[%s1] sm:$0xf]
    %v40 = vld [vmem:[%s1 + $0x4] sm:$0xf]
    %v41 = vld [vmem:[%s1 + $0x8] sm:$0xf]
    %v42 = vld [vmem:[%s1 + $0xc] sm:$0xf]
    %v43 = vld [vmem:[%s1 + $0x10] sm:$0xf]
    %v44 = vld [vmem:[%s1 + $0x14] sm:$0xf]
    %v45 = vld [vmem:[%s1 + $0x18] sm:$0xf]
    %v46 = vld [vmem:[%s1 + $0x1c] sm:$0xf]
    %v47 = vld [vmem:[%s1 + $0x20] sm:$0xf]
    %v48 = vld [vmem:[%s1 + $0x24] sm:$0xf]
    %v49 = vld [vmem:[%s1 + $0x28] sm:$0xf]
    %v50 = vld [vmem:[%s1 + $0x2c] sm:$0xf]
    %v51 = vld [vmem:[%s1 + $0x30] sm:$0xf]
    %v52 = vld [vmem:[%s1 + $0x34] sm:$0xf]
    %v53 = vld [vmem:[%s1 + $0x38] sm:$0xf]
    %v54 = vld [vmem:[%s1 + $0x3c] sm:$0xf]
    %v55 = vld [vmem:[%s2] sm:$0xf]
    %v56 = vld [vmem:[%s2 + $0x4] sm:$0xf]
    %v57 = vld [vmem:[%s2 + $0x8] sm:$0xf]
    %v58 = vld [vmem:[%s2 + $0xc] sm:$0xf]
    %v75 = vunpack.c.l.b16 %v39
    %v76 = vunpack.c.l.b16 %v40
    %v77 = vunpack.c.l.b16 %v41
    %v78 = vunpack.c.l.b16 %v42
    %v79 = vunpack.c.l.b16 %v43
    %v80 = vunpack.c.l.b16 %v44
    %v81 = vunpack.c.l.b16 %v45
    %v82 = vunpack.c.l.b16 %v46
    %v83 = vunpack.c.l.b16 %v47
    %v84 = vunpack.c.l.b16 %v48
    %v85 = vunpack.c.l.b16 %v49
    %v86 = vunpack.c.l.b16 %v50
    %v87 = vunpack.c.l.b16 %v51
    %v88 = vunpack.c.l.b16 %v52
    %v89 = vunpack.c.l.b16 %v53
    %v90 = vunpack.c.l.b16 %v54
    %v91 = vpack.c.b16 %v76, %v75
    %v92 = vpack.c.b16 %v78, %v77
    %v93 = vpack.c.b16 %v80, %v79
    %v94 = vpack.c.b16 %v82, %v81
    %v95 = vpack.c.b16 %v84, %v83
    %v96 = vpack.c.b16 %v86, %v85
    %v97 = vpack.c.b16 %v88, %v87
    %v98 = vpack.c.b16 %v90, %v89
    %v103 = vunpack.c.l.b16 %v55
    %v104 = vunpack.c.l.b16 %v56
    %v105 = vunpack.c.l.b16 %v57
    %v106 = vunpack.c.l.b16 %v58
    %v107 = vpack.c.b16 %v104, %v103
    %v108 = vpack.c.b16 %v106, %v105
    %vm111 = vcmask 261120
    %v113 = vsel %vm111, %v91, 0
    %v116 = vsel %vm111, %v92, 0
    %v119 = vsel %vm111, %v93, 0
    %v122 = vsel %vm111, %v94, 0
    %v125 = vsel %vm111, %v95, 0
    %v128 = vsel %vm111, %v96, 0
    %v131 = vsel %vm111, %v97, 0
    %v134 = vsel %vm111, %v98, 0
    %136 = vmatprep.subr.bf16.mxu0 0
    %137 = vmatpush1.bf16.msra.mxu0 0
    %138 = vmatprep.subr.bf16.mxu0 0
    %139 = vmatpush1.bf16.msra.mxu0 0
    %140 = vmatprep.subr.bf16.mxu0 0
    %141 = vmatpush1.bf16.msra.mxu0 0
    %142 = vmatprep.subr.bf16.mxu0 0
    %143 = vmatpush1.bf16.msra.mxu0 0
    %144 = vmatprep.subr.bf16.mxu0 0
    %145 = vmatpush1.bf16.msra.mxu0 0
    %146 = vmatprep.subr.bf16.mxu0 0
    %147 = vmatpush1.bf16.msra.mxu0 0
    %148 = vmatprep.subr.bf16.mxu0 0
    %149 = vmatpush1.bf16.msra.mxu0 %v108
    %150 = vmatprep.subr.bf16.mxu0 0
    %151 = vmatpush1.bf16.msra.mxu0 %v107
    %152 = vmatprep.subr.bf16.mxu0 0
    %153 = vmatpush2.bf16.msra.mxu0 0
    %154 = vmatprep.subr.bf16.mxu0 0
    %155 = vmatpush2.bf16.msra.mxu0 0
    %156 = vmatprep.subr.bf16.mxu0 0
    %157 = vmatpush2.bf16.msra.mxu0 0
    %158 = vmatprep.subr.bf16.mxu0 0
    %159 = vmatpush2.bf16.msra.mxu0 0
    %160 = vmatprep.subr.bf16.mxu0 0
    %161 = vmatpush2.bf16.msra.mxu0 0
    %162 = vmatprep.subr.bf16.mxu0 0
    %163 = vmatpush2.bf16.msra.mxu0 0
    %164 = vmatprep.subr.bf16.mxu0 0
    %165 = vmatpush2.bf16.msra.mxu0 0
    %166 = vmatprep.subr.bf16.mxu0 0
    %167 = vmatpush2.bf16.msra.mxu0 0
    %168 = vmatprep.mubr.bf16.mxu0 0
    %169 = vmatmul.mubr.bf16.gmra.mxu0 %v113
    %v170 = vpop.f32.mrf.mxu0
    %v171 = vadd.f32 0.0, %v170
    %v172 = vpop.f32.mrf.mxu0
    %v173 = vpop.f32.mrf.mxu0
    %v174 = vadd.f32 0.0, %v173
    %v175 = vpop.f32.mrf.mxu0
    %176 = vmatprep.mubr.bf16.mxu0 0
    %177 = vmatmul.mubr.bf16.gmra.mxu0 %v116
    %v178 = vpop.f32.mrf.mxu0
    %v179 = vadd.f32 0.0, %v178
    %v180 = vpop.f32.mrf.mxu0
    %v181 = vpop.f32.mrf.mxu0
    %v182 = vadd.f32 0.0, %v181
    %v183 = vpop.f32.mrf.mxu0
    %184 = vmatprep.mubr.bf16.mxu0 0
    %185 = vmatmul.mubr.bf16.gmra.mxu0 %v119
    %v186 = vpop.f32.mrf.mxu0
    %v187 = vadd.f32 0.0, %v186
    %v188 = vpop.f32.mrf.mxu0
    %v189 = vpop.f32.mrf.mxu0
    %v190 = vadd.f32 0.0, %v189
    %v191 = vpop.f32.mrf.mxu0
    %192 = vmatprep.mubr.bf16.mxu0 0
    %193 = vmatmul.mubr.bf16.gmra.mxu0 %v122
    %v194 = vpop.f32.mrf.mxu0
    %v195 = vadd.f32 0.0, %v194
    %v196 = vpop.f32.mrf.mxu0
    %v197 = vpop.f32.mrf.mxu0
    %v198 = vadd.f32 0.0, %v197
    %v199 = vpop.f32.mrf.mxu0
    %200 = vmatprep.mubr.bf16.mxu0 0
    %201 = vmatmul.mubr.bf16.gmra.mxu0 %v125
    %v202 = vpop.f32.mrf.mxu0
    %v203 = vadd.f32 0.0, %v202
    %v204 = vpop.f32.mrf.mxu0
    %v205 = vpop.f32.mrf.mxu0
    %v206 = vadd.f32 0.0, %v205
    %v207 = vpop.f32.mrf.mxu0
    %208 = vmatprep.mubr.bf16.mxu0 0
    %209 = vmatmul.mubr.bf16.gmra.mxu0 %v128
    %v210 = vpop.f32.mrf.mxu0
    %v211 = vadd.f32 0.0, %v210
    %v212 = vpop.f32.mrf.mxu0
    %v213 = vpop.f32.mrf.mxu0
    %v214 = vadd.f32 0.0, %v213
    %v215 = vpop.f32.mrf.mxu0
    %216 = vmatprep.mubr.bf16.mxu0 0
    %217 = vmatmul.mubr.bf16.gmra.mxu0 %v131
    %v218 = vpop.f32.mrf.mxu0
    %v219 = vadd.f32 0.0, %v218
    %v220 = vpop.f32.mrf.mxu0
    %v221 = vpop.f32.mrf.mxu0
    %v222 = vadd.f32 0.0, %v221
    %v223 = vpop.f32.mrf.mxu0
    %224 = vmatprep.mubr.bf16.mxu0 0
    %225 = vmatmul.mubr.bf16.gmra.mxu0 %v134
    %v226 = vpop.f32.mrf.mxu0
    %v227 = vadd.f32 0.0, %v226
    %v228 = vpop.f32.mrf.mxu0
    %v229 = vpop.f32.mrf.mxu0
    %v230 = vadd.f32 0.0, %v229
    %v231 = vpop.f32.mrf.mxu0
    %232 = vdwg.mxu0
    %v233 = vld [vmem:[%s0] sm:$0xf]
    %v234 = vld [vmem:[%s0 + $0x4] sm:$0xf]
    %v235 = vld [vmem:[%s0 + $0x8] sm:$0xf]
    %v236 = vld [vmem:[%s0 + $0xc] sm:$0xf]
    %v237 = vld [vmem:[%s0 + $0x10] sm:$0xf]
    %v238 = vld [vmem:[%s0 + $0x14] sm:$0xf]
    %v239 = vld [vmem:[%s0 + $0x18] sm:$0xf]
    %v240 = vld [vmem:[%s0 + $0x1c] sm:$0xf]
    %v241 = vld [vmem:[%s0 + $0x20] sm:$0xf]
    %v242 = vld [vmem:[%s0 + $0x24] sm:$0xf]
    %v243 = vld [vmem:[%s0 + $0x28] sm:$0xf]
    %v244 = vld [vmem:[%s0 + $0x2c] sm:$0xf]
    %v245 = vld [vmem:[%s0 + $0x30] sm:$0xf]
    %v246 = vld [vmem:[%s0 + $0x34] sm:$0xf]
    %v247 = vld [vmem:[%s0 + $0x38] sm:$0xf]
    %v248 = vld [vmem:[%s0 + $0x3c] sm:$0xf]
    %v249 = vpack.c.bf16 %v174, %v171
    %v250 = vpack.c.bf16 %v182, %v179
    %v251 = vpack.c.bf16 %v190, %v187
    %v252 = vpack.c.bf16 %v198, %v195
    %v253 = vpack.c.bf16 %v206, %v203
    %v254 = vpack.c.bf16 %v214, %v211
    %v255 = vpack.c.bf16 %v222, %v219
    %v256 = vpack.c.bf16 %v230, %v227
    %v257 = vld [vmem:[%s3] sm:$0x1]
    %v259 = vlaneseq
    %v260 = vshrl.u32 %v259, 7
    %v261 = vsub.s32 0, %v260
    %v262 = vrot.slane %v257, %v261
    %v280 = vunpack.c.l.b16 %v233
    %v281 = vunpack.c.l.b16 %v234
    %v282 = vunpack.c.l.b16 %v235
    %v283 = vunpack.c.l.b16 %v236
    %v284 = vunpack.c.l.b16 %v237
    %v285 = vunpack.c.l.b16 %v238
    %v286 = vunpack.c.l.b16 %v239
    %v287 = vunpack.c.l.b16 %v240
    %v288 = vunpack.c.l.b16 %v241
    %v289 = vunpack.c.l.b16 %v242
    %v290 = vunpack.c.l.b16 %v243
    %v291 = vunpack.c.l.b16 %v244
    %v292 = vunpack.c.l.b16 %v245
    %v293 = vunpack.c.l.b16 %v246
    %v294 = vunpack.c.l.b16 %v247
    %v295 = vunpack.c.l.b16 %v248
    %v296 = vpack.c.b16 %v281, %v280
    %v297 = vpack.c.b16 %v283, %v282
    %v298 = vpack.c.b16 %v285, %v284
    %v299 = vpack.c.b16 %v287, %v286
    %v300 = vpack.c.b16 %v289, %v288
    %v301 = vpack.c.b16 %v291, %v290
    %v302 = vpack.c.b16 %v293, %v292
    %v303 = vpack.c.b16 %v295, %v294
    %312 = vmatprep.subr.bf16.mxu0 0
    %313 = vmatpush1.bf16.msra.mxu0 %v256
    %314 = vmatprep.subr.bf16.mxu0 0
    %315 = vmatpush1.bf16.msra.mxu0 %v255
    %316 = vmatprep.subr.bf16.mxu0 0
    %317 = vmatpush1.bf16.msra.mxu0 %v254
    %318 = vmatprep.subr.bf16.mxu0 0
    %319 = vmatpush1.bf16.msra.mxu0 %v253
    %320 = vmatprep.subr.bf16.mxu0 0
    %321 = vmatpush1.bf16.msra.mxu0 %v252
    %322 = vmatprep.subr.bf16.mxu0 0
    %323 = vmatpush1.bf16.msra.mxu0 %v251
    %324 = vmatprep.subr.bf16.mxu0 0
    %325 = vmatpush1.bf16.msra.mxu0 %v250
    %326 = vmatprep.subr.bf16.mxu0 0
    %327 = vmatpush1.bf16.msra.mxu0 %v249
    %328 = vmatprep.subr.bf16.mxu0 0
    %329 = vmatpush2.bf16.msra.mxu0 0
    %330 = vmatprep.subr.bf16.mxu0 0
    %331 = vmatpush2.bf16.msra.mxu0 0
    %332 = vmatprep.subr.bf16.mxu0 0
    %333 = vmatpush2.bf16.msra.mxu0 0
    %334 = vmatprep.subr.bf16.mxu0 0
    %335 = vmatpush2.bf16.msra.mxu0 0
    %336 = vmatprep.subr.bf16.mxu0 0
    %337 = vmatpush2.bf16.msra.mxu0 0
    %338 = vmatprep.subr.bf16.mxu0 0
    %339 = vmatpush2.bf16.msra.mxu0 0
    %340 = vmatprep.subr.bf16.mxu0 0
    %341 = vmatpush2.bf16.msra.mxu0 0
    %342 = vmatprep.subr.bf16.mxu0 0
    %343 = vmatpush2.bf16.msra.mxu0 0
    %344 = vmatprep.mubr.bf16.mxu0 0
    %345 = vmatmul.mubr.bf16.gmra.mxu0 %v296
    %v346 = vpop.f32.mrf.mxu0
    %v347 = vadd.f32 %v262, %v346
    %v348 = vpop.f32.mrf.mxu0
    %v349 = vpop.f32.mrf.mxu0
    %v350 = vadd.f32 %v262, %v349
    %v351 = vpop.f32.mrf.mxu0
    %352 = vmatprep.mubr.bf16.mxu0 0
    %353 = vmatmul.mubr.bf16.gmra.mxu0 %v297
    %v354 = vpop.f32.mrf.mxu0
    %v355 = vadd.f32 %v262, %v354
    %v356 = vpop.f32.mrf.mxu0
    %v357 = vpop.f32.mrf.mxu0
    %v358 = vadd.f32 %v262, %v357
    %v359 = vpop.f32.mrf.mxu0
    %360 = vmatprep.mubr.bf16.mxu0 0
    %361 = vmatmul.mubr.bf16.gmra.mxu0 %v298
    %v362 = vpop.f32.mrf.mxu0
    %v363 = vadd.f32 %v262, %v362
    %v364 = vpop.f32.mrf.mxu0
    %v365 = vpop.f32.mrf.mxu0
    %v366 = vadd.f32 %v262, %v365
    %v367 = vpop.f32.mrf.mxu0
    %368 = vmatprep.mubr.bf16.mxu0 0
    %369 = vmatmul.mubr.bf16.gmra.mxu0 %v299
    %v370 = vpop.f32.mrf.mxu0
    %v371 = vadd.f32 %v262, %v370
    %v372 = vpop.f32.mrf.mxu0
    %v373 = vpop.f32.mrf.mxu0
    %v374 = vadd.f32 %v262, %v373
    %v375 = vpop.f32.mrf.mxu0
    %376 = vmatprep.mubr.bf16.mxu0 0
    %377 = vmatmul.mubr.bf16.gmra.mxu0 %v300
    %v378 = vpop.f32.mrf.mxu0
    %v379 = vadd.f32 %v262, %v378
    %v380 = vpop.f32.mrf.mxu0
    %v381 = vpop.f32.mrf.mxu0
    %v382 = vadd.f32 %v262, %v381
    %v383 = vpop.f32.mrf.mxu0
    %384 = vmatprep.mubr.bf16.mxu0 0
    %385 = vmatmul.mubr.bf16.gmra.mxu0 %v301
    %v386 = vpop.f32.mrf.mxu0
    %v387 = vadd.f32 %v262, %v386
    %v388 = vpop.f32.mrf.mxu0
    %v389 = vpop.f32.mrf.mxu0
    %v390 = vadd.f32 %v262, %v389
    %v391 = vpop.f32.mrf.mxu0
    %392 = vmatprep.mubr.bf16.mxu0 0
    %393 = vmatmul.mubr.bf16.gmra.mxu0 %v302
    %v394 = vpop.f32.mrf.mxu0
    %v395 = vadd.f32 %v262, %v394
    %v396 = vpop.f32.mrf.mxu0
    %v397 = vpop.f32.mrf.mxu0
    %v398 = vadd.f32 %v262, %v397
    %v399 = vpop.f32.mrf.mxu0
    %400 = vmatprep.mubr.bf16.mxu0 0
    %401 = vmatmul.mubr.bf16.gmra.mxu0 %v303
    %v402 = vpop.f32.mrf.mxu0
    %v403 = vadd.f32 %v262, %v402
    %v404 = vpop.f32.mrf.mxu0
    %v405 = vpop.f32.mrf.mxu0
    %v406 = vadd.f32 %v262, %v405
    %v407 = vpop.f32.mrf.mxu0
    %408 = vdwg.mxu0
    %v409 = vmax.f32 %v347, 0.0
    %v410 = vmax.f32 %v350, 0.0
    %v411 = vmax.f32 %v355, 0.0
    %v412 = vmax.f32 %v358, 0.0
    %v413 = vmax.f32 %v363, 0.0
    %v414 = vmax.f32 %v366, 0.0
    %v415 = vmax.f32 %v371, 0.0
    %v416 = vmax.f32 %v374, 0.0
    %v417 = vmax.f32 %v379, 0.0
    %v418 = vmax.f32 %v382, 0.0
    %v419 = vmax.f32 %v387, 0.0
    %v420 = vmax.f32 %v390, 0.0
    %v421 = vmax.f32 %v395, 0.0
    %v422 = vmax.f32 %v398, 0.0
    %v423 = vmax.f32 %v403, 0.0
    %v424 = vmax.f32 %v406, 0.0
    %v425 = vpack.c.bf16 %v410, %v409
    %v426 = vpack.c.bf16 %v412, %v411
    %v427 = vpack.c.bf16 %v414, %v413
    %v428 = vpack.c.bf16 %v416, %v415
    %v429 = vpack.c.bf16 %v418, %v417
    %v430 = vpack.c.bf16 %v420, %v419
    %v431 = vpack.c.bf16 %v422, %v421
    %v432 = vpack.c.bf16 %v424, %v423
    %v441 = vunpack.c.l.b16 %v425
    %v442 = vunpack.c.h.b16 %v425
    %v443 = vunpack.c.l.b16 %v426
    %v444 = vunpack.c.h.b16 %v426
    %v445 = vunpack.c.l.b16 %v427
    %v446 = vunpack.c.h.b16 %v427
    %v447 = vunpack.c.l.b16 %v428
    %v448 = vunpack.c.h.b16 %v428
    %v449 = vunpack.c.l.b16 %v429
    %v450 = vunpack.c.h.b16 %v429
    %v451 = vunpack.c.l.b16 %v430
    %v452 = vunpack.c.h.b16 %v430
    %v453 = vunpack.c.l.b16 %v431
    %v454 = vunpack.c.h.b16 %v431
    %v455 = vunpack.c.l.b16 %v432
    %v456 = vunpack.c.h.b16 %v432
    %v457 = vpack.c.b16 %v441, %v441
    %v458 = vpack.c.b16 %v442, %v442
    %v459 = vpack.c.b16 %v443, %v443
    %v460 = vpack.c.b16 %v444, %v444
    %v461 = vpack.c.b16 %v445, %v445
    %v462 = vpack.c.b16 %v446, %v446
    %v463 = vpack.c.b16 %v447, %v447
    %v464 = vpack.c.b16 %v448, %v448
    %v465 = vpack.c.b16 %v449, %v449
    %v466 = vpack.c.b16 %v450, %v450
    %v467 = vpack.c.b16 %v451, %v451
    %v468 = vpack.c.b16 %v452, %v452
    %v469 = vpack.c.b16 %v453, %v453
    %v470 = vpack.c.b16 %v454, %v454
    %v471 = vpack.c.b16 %v455, %v455
    %v472 = vpack.c.b16 %v456, %v456
    %489 = vst [vmem:[#allocation2] sm:$0xf] %v457
    %490 = vst [vmem:[#allocation2 + $0x4] sm:$0xf] %v458
    %491 = vst [vmem:[#allocation2 + $0x8] sm:$0xf] %v459
    %492 = vst [vmem:[#allocation2 + $0xc] sm:$0xf] %v460
    %493 = vst [vmem:[#allocation2 + $0x10] sm:$0xf] %v461
    %494 = vst [vmem:[#allocation2 + $0x14] sm:$0xf] %v462
    %495 = vst [vmem:[#allocation2 + $0x18] sm:$0xf] %v463
    %496 = vst [vmem:[#allocation2 + $0x1c] sm:$0xf] %v464
    %497 = vst [vmem:[#allocation2 + $0x20] sm:$0xf] %v465
    %498 = vst [vmem:[#allocation2 + $0x24] sm:$0xf] %v466
    %499 = vst [vmem:[#allocation2 + $0x28] sm:$0xf] %v467
    %500 = vst [vmem:[#allocation2 + $0x2c] sm:$0xf] %v468
    %501 = vst [vmem:[#allocation2 + $0x30] sm:$0xf] %v469
    %502 = vst [vmem:[#allocation2 + $0x34] sm:$0xf] %v470
    %503 = vst [vmem:[#allocation2 + $0x38] sm:$0xf] %v471
    %504 = vst [vmem:[#allocation2 + $0x3c] sm:$0xf] %v472
    %v505 = vld [vmem:[#allocation2] sm:$0xf]
    %v506 = vld [vmem:[#allocation2 + $0x4] sm:$0xf]
    %v507 = vld [vmem:[#allocation2 + $0x8] sm:$0xf]
    %v508 = vld [vmem:[#allocation2 + $0xc] sm:$0xf]
    %v509 = vld [vmem:[#allocation2 + $0x10] sm:$0xf]
    %v510 = vld [vmem:[#allocation2 + $0x14] sm:$0xf]
    %v511 = vld [vmem:[#allocation2 + $0x18] sm:$0xf]
    %v512 = vld [vmem:[#allocation2 + $0x1c] sm:$0xf]
    %v513 = vld [vmem:[#allocation2 + $0x20] sm:$0xf]
    %v514 = vld [vmem:[#allocation2 + $0x24] sm:$0xf]
    %v515 = vld [vmem:[#allocation2 + $0x28] sm:$0xf]
    %v516 = vld [vmem:[#allocation2 + $0x2c] sm:$0xf]
    %v517 = vld [vmem:[#allocation2 + $0x30] sm:$0xf]
    %v518 = vld [vmem:[#allocation2 + $0x34] sm:$0xf]
    %v519 = vld [vmem:[#allocation2 + $0x38] sm:$0xf]
    %v520 = vld [vmem:[#allocation2 + $0x3c] sm:$0xf]
    %v521 = vld [vmem:[#allocation3] sm:$0xf]
    %v522 = vld [vmem:[#allocation3 + $0x4] sm:$0xf]
    %v523 = vld [vmem:[#allocation3 + $0x8] sm:$0xf]
    %v524 = vld [vmem:[#allocation3 + $0xc] sm:$0xf]
    %v525 = vld [vmem:[#allocation3 + $0x10] sm:$0xf]
    %v526 = vld [vmem:[#allocation3 + $0x14] sm:$0xf]
    %v527 = vld [vmem:[#allocation3 + $0x18] sm:$0xf]
    %v528 = vld [vmem:[#allocation3 + $0x1c] sm:$0xf]
    %v529 = vld [vmem:[#allocation3 + $0x20] sm:$0xf]
    %v530 = vld [vmem:[#allocation3 + $0x24] sm:$0xf]
    %v531 = vld [vmem:[#allocation3 + $0x28] sm:$0xf]
    %v532 = vld [vmem:[#allocation3 + $0x2c] sm:$0xf]
    %v533 = vld [vmem:[#allocation3 + $0x30] sm:$0xf]
    %v534 = vld [vmem:[#allocation3 + $0x34] sm:$0xf]
    %v535 = vld [vmem:[#allocation3 + $0x38] sm:$0xf]
    %v536 = vld [vmem:[#allocation3 + $0x3c] sm:$0xf]
    %v553 = vunpack.c.l.b16 %v505
    %v554 = vunpack.c.l.b16 %v506
    %v555 = vunpack.c.l.b16 %v507
    %v556 = vunpack.c.l.b16 %v508
    %v557 = vunpack.c.l.b16 %v509
    %v558 = vunpack.c.l.b16 %v510
    %v559 = vunpack.c.l.b16 %v511
    %v560 = vunpack.c.l.b16 %v512
    %v561 = vunpack.c.l.b16 %v513
    %v562 = vunpack.c.l.b16 %v514
    %v563 = vunpack.c.l.b16 %v515
    %v564 = vunpack.c.l.b16 %v516
    %v565 = vunpack.c.l.b16 %v517
    %v566 = vunpack.c.l.b16 %v518
    %v567 = vunpack.c.l.b16 %v519
    %v568 = vunpack.c.l.b16 %v520
    %v569 = vpack.c.b16 %v554, %v553
    %v570 = vpack.c.b16 %v556, %v555
    %v571 = vpack.c.b16 %v558, %v557
    %v572 = vpack.c.b16 %v560, %v559
    %v573 = vpack.c.b16 %v562, %v561
    %v574 = vpack.c.b16 %v564, %v563
    %v575 = vpack.c.b16 %v566, %v565
    %v576 = vpack.c.b16 %v568, %v567
    %v601 = vunpack.c.l.b16 %v521
    %v602 = vunpack.c.l.b16 %v522
    %v603 = vunpack.c.l.b16 %v523
    %v604 = vunpack.c.l.b16 %v524
    %v605 = vunpack.c.l.b16 %v525
    %v606 = vunpack.c.l.b16 %v526
    %v607 = vunpack.c.l.b16 %v527
    %v608 = vunpack.c.l.b16 %v528
    %v609 = vunpack.c.l.b16 %v529
    %v610 = vunpack.c.l.b16 %v530
    %v611 = vunpack.c.l.b16 %v531
    %v612 = vunpack.c.l.b16 %v532
    %v613 = vunpack.c.l.b16 %v533
    %v614 = vunpack.c.l.b16 %v534
    %v615 = vunpack.c.l.b16 %v535
    %v616 = vunpack.c.l.b16 %v536
    %v617 = vpack.c.b16 %v602, %v601
    %v618 = vpack.c.b16 %v604, %v603
    %v619 = vpack.c.b16 %v606, %v605
    %v620 = vpack.c.b16 %v608, %v607
    %v621 = vpack.c.b16 %v610, %v609
    %v622 = vpack.c.b16 %v612, %v611
    %v623 = vpack.c.b16 %v614, %v613
    %v624 = vpack.c.b16 %v616, %v615
    %633 = vmatprep.subr.bf16.mxu0 0
    %634 = vmatpush1.bf16.msra.mxu0 %v624
    %635 = vmatprep.subr.bf16.mxu0 0
    %636 = vmatpush1.bf16.msra.mxu0 %v623
    %637 = vmatprep.subr.bf16.mxu0 0
    %638 = vmatpush1.bf16.msra.mxu0 %v622
    %639 = vmatprep.subr.bf16.mxu0 0
    %640 = vmatpush1.bf16.msra.mxu0 %v621
    %641 = vmatprep.subr.bf16.mxu0 0
    %642 = vmatpush1.bf16.msra.mxu0 %v620
    %643 = vmatprep.subr.bf16.mxu0 0
    %644 = vmatpush1.bf16.msra.mxu0 %v619
    %645 = vmatprep.subr.bf16.mxu0 0
    %646 = vmatpush1.bf16.msra.mxu0 %v618
    %647 = vmatprep.subr.bf16.mxu0 0
    %648 = vmatpush1.bf16.msra.mxu0 %v617
    %649 = vmatprep.subr.bf16.mxu0 0
    %650 = vmatpush2.bf16.msra.mxu0 0
    %651 = vmatprep.subr.bf16.mxu0 0
    %652 = vmatpush2.bf16.msra.mxu0 0
    %653 = vmatprep.subr.bf16.mxu0 0
    %654 = vmatpush2.bf16.msra.mxu0 0
    %655 = vmatprep.subr.bf16.mxu0 0
    %656 = vmatpush2.bf16.msra.mxu0 0
    %657 = vmatprep.subr.bf16.mxu0 0
    %658 = vmatpush2.bf16.msra.mxu0 0
    %659 = vmatprep.subr.bf16.mxu0 0
    %660 = vmatpush2.bf16.msra.mxu0 0
    %661 = vmatprep.subr.bf16.mxu0 0
    %662 = vmatpush2.bf16.msra.mxu0 0
    %663 = vmatprep.subr.bf16.mxu0 0
    %664 = vmatpush2.bf16.msra.mxu0 0
    %665 = vmatprep.mubr.bf16.mxu0 0
    %666 = vmatmul.mubr.bf16.gmra.mxu0 %v569
    %v667 = vpop.f32.mrf.mxu0
    %v668 = vadd.f32 0.0, %v667
    %v669 = vpop.f32.mrf.mxu0
    %v670 = vpop.f32.mrf.mxu0
    %v671 = vadd.f32 0.0, %v670
    %v672 = vpop.f32.mrf.mxu0
    %673 = vmatprep.mubr.bf16.mxu0 0
    %674 = vmatmul.mubr.bf16.gmra.mxu0 %v570
    %v675 = vpop.f32.mrf.mxu0
    %v676 = vadd.f32 0.0, %v675
    %v677 = vpop.f32.mrf.mxu0
    %v678 = vpop.f32.mrf.mxu0
    %v679 = vadd.f32 0.0, %v678
    %v680 = vpop.f32.mrf.mxu0
    %681 = vmatprep.mubr.bf16.mxu0 0
    %682 = vmatmul.mubr.bf16.gmra.mxu0 %v571
    %v683 = vpop.f32.mrf.mxu0
    %v684 = vadd.f32 0.0, %v683
    %v685 = vpop.f32.mrf.mxu0
    %v686 = vpop.f32.mrf.mxu0
    %v687 = vadd.f32 0.0, %v686
    %v688 = vpop.f32.mrf.mxu0
    %689 = vmatprep.mubr.bf16.mxu0 0
    %690 = vmatmul.mubr.bf16.gmra.mxu0 %v572
    %v691 = vpop.f32.mrf.mxu0
    %v692 = vadd.f32 0.0, %v691
    %v693 = vpop.f32.mrf.mxu0
    %v694 = vpop.f32.mrf.mxu0
    %v695 = vadd.f32 0.0, %v694
    %v696 = vpop.f32.mrf.mxu0
    %697 = vmatprep.mubr.bf16.mxu0 0
    %698 = vmatmul.mubr.bf16.gmra.mxu0 %v573
    %v699 = vpop.f32.mrf.mxu0
    %v700 = vadd.f32 0.0, %v699
    %v701 = vpop.f32.mrf.mxu0
    %v702 = vpop.f32.mrf.mxu0
    %v703 = vadd.f32 0.0, %v702
    %v704 = vpop.f32.mrf.mxu0
    %705 = vmatprep.mubr.bf16.mxu0 0
    %706 = vmatmul.mubr.bf16.gmra.mxu0 %v574
    %v707 = vpop.f32.mrf.mxu0
    %v708 = vadd.f32 0.0, %v707
    %v709 = vpop.f32.mrf.mxu0
    %v710 = vpop.f32.mrf.mxu0
    %v711 = vadd.f32 0.0, %v710
    %v712 = vpop.f32.mrf.mxu0
    %713 = vmatprep.mubr.bf16.mxu0 0
    %714 = vmatmul.mubr.bf16.gmra.mxu0 %v575
    %v715 = vpop.f32.mrf.mxu0
    %v716 = vadd.f32 0.0, %v715
    %v717 = vpop.f32.mrf.mxu0
    %v718 = vpop.f32.mrf.mxu0
    %v719 = vadd.f32 0.0, %v718
    %v720 = vpop.f32.mrf.mxu0
    %721 = vmatprep.mubr.bf16.mxu0 0
    %722 = vmatmul.mubr.bf16.gmra.mxu0 %v576
    %v723 = vpop.f32.mrf.mxu0
    %v724 = vadd.f32 0.0, %v723
    %v725 = vpop.f32.mrf.mxu0
    %v726 = vpop.f32.mrf.mxu0
    %v727 = vadd.f32 0.0, %v726
    %v728 = vpop.f32.mrf.mxu0
    %729 = vdwg.mxu0
    %v730 = vld [vmem:[%s0] sm:$0xf]
    %v731 = vld [vmem:[%s0 + $0x4] sm:$0xf]
    %v732 = vld [vmem:[%s0 + $0x8] sm:$0xf]
    %v733 = vld [vmem:[%s0 + $0xc] sm:$0xf]
    %v734 = vld [vmem:[%s0 + $0x10] sm:$0xf]
    %v735 = vld [vmem:[%s0 + $0x14] sm:$0xf]
    %v736 = vld [vmem:[%s0 + $0x18] sm:$0xf]
    %v737 = vld [vmem:[%s0 + $0x1c] sm:$0xf]
    %v738 = vld [vmem:[%s0 + $0x20] sm:$0xf]
    %v739 = vld [vmem:[%s0 + $0x24] sm:$0xf]
    %v740 = vld [vmem:[%s0 + $0x28] sm:$0xf]
    %v741 = vld [vmem:[%s0 + $0x2c] sm:$0xf]
    %v742 = vld [vmem:[%s0 + $0x30] sm:$0xf]
    %v743 = vld [vmem:[%s0 + $0x34] sm:$0xf]
    %v744 = vld [vmem:[%s0 + $0x38] sm:$0xf]
    %v745 = vld [vmem:[%s0 + $0x3c] sm:$0xf]
    %v746 = vpack.c.bf16 %v671, %v668
    %v747 = vpack.c.bf16 %v679, %v676
    %v748 = vpack.c.bf16 %v687, %v684
    %v749 = vpack.c.bf16 %v695, %v692
    %v750 = vpack.c.bf16 %v703, %v700
    %v751 = vpack.c.bf16 %v711, %v708
    %v752 = vpack.c.bf16 %v719, %v716
    %v753 = vpack.c.bf16 %v727, %v724
    %v754 = vld [vmem:[%s5] sm:$0x1]
    %v756 = vlaneseq
    %v757 = vshrl.u32 %v756, 7
    %v758 = vsub.s32 0, %v757
    %v759 = vrot.slane %v754, %v758
    %v777 = vunpack.c.l.b16 %v730
    %v778 = vunpack.c.l.b16 %v731
    %v779 = vunpack.c.l.b16 %v732
    %v780 = vunpack.c.l.b16 %v733
    %v781 = vunpack.c.l.b16 %v734
    %v782 = vunpack.c.l.b16 %v735
    %v783 = vunpack.c.l.b16 %v736
    %v784 = vunpack.c.l.b16 %v737
    %v785 = vunpack.c.l.b16 %v738
    %v786 = vunpack.c.l.b16 %v739
    %v787 = vunpack.c.l.b16 %v740
    %v788 = vunpack.c.l.b16 %v741
    %v789 = vunpack.c.l.b16 %v742
    %v790 = vunpack.c.l.b16 %v743
    %v791 = vunpack.c.l.b16 %v744
    %v792 = vunpack.c.l.b16 %v745
    %v793 = vpack.c.b16 %v778, %v777
    %v794 = vpack.c.b16 %v780, %v779
    %v795 = vpack.c.b16 %v782, %v781
    %v796 = vpack.c.b16 %v784, %v783
    %v797 = vpack.c.b16 %v786, %v785
    %v798 = vpack.c.b16 %v788, %v787
    %v799 = vpack.c.b16 %v790, %v789
    %v800 = vpack.c.b16 %v792, %v791
    %809 = vmatprep.subr.bf16.mxu0 0
    %810 = vmatpush1.bf16.msra.mxu0 %v753
    %811 = vmatprep.subr.bf16.mxu0 0
    %812 = vmatpush1.bf16.msra.mxu0 %v752
    %813 = vmatprep.subr.bf16.mxu0 0
    %814 = vmatpush1.bf16.msra.mxu0 %v751
    %815 = vmatprep.subr.bf16.mxu0 0
    %816 = vmatpush1.bf16.msra.mxu0 %v750
    %817 = vmatprep.subr.bf16.mxu0 0
    %818 = vmatpush1.bf16.msra.mxu0 %v749
    %819 = vmatprep.subr.bf16.mxu0 0
    %820 = vmatpush1.bf16.msra.mxu0 %v748
    %821 = vmatprep.subr.bf16.mxu0 0
    %822 = vmatpush1.bf16.msra.mxu0 %v747
    %823 = vmatprep.subr.bf16.mxu0 0
    %824 = vmatpush1.bf16.msra.mxu0 %v746
    %825 = vmatprep.subr.bf16.mxu0 0
    %826 = vmatpush2.bf16.msra.mxu0 0
    %827 = vmatprep.subr.bf16.mxu0 0
    %828 = vmatpush2.bf16.msra.mxu0 0
    %829 = vmatprep.subr.bf16.mxu0 0
    %830 = vmatpush2.bf16.msra.mxu0 0
    %831 = vmatprep.subr.bf16.mxu0 0
    %832 = vmatpush2.bf16.msra.mxu0 0
    %833 = vmatprep.subr.bf16.mxu0 0
    %834 = vmatpush2.bf16.msra.mxu0 0
    %835 = vmatprep.subr.bf16.mxu0 0
    %836 = vmatpush2.bf16.msra.mxu0 0
    %837 = vmatprep.subr.bf16.mxu0 0
    %838 = vmatpush2.bf16.msra.mxu0 0
    %839 = vmatprep.subr.bf16.mxu0 0
    %840 = vmatpush2.bf16.msra.mxu0 0
    %841 = vmatprep.mubr.bf16.mxu0 0
    %842 = vmatmul.mubr.bf16.gmra.mxu0 %v793
    %v843 = vpop.f32.mrf.mxu0
    %v844 = vadd.f32 %v759, %v843
    %v845 = vpop.f32.mrf.mxu0
    %v846 = vpop.f32.mrf.mxu0
    %v847 = vadd.f32 %v759, %v846
    %v848 = vpop.f32.mrf.mxu0
    %849 = vmatprep.mubr.bf16.mxu0 0
    %850 = vmatmul.mubr.bf16.gmra.mxu0 %v794
    %v851 = vpop.f32.mrf.mxu0
    %v852 = vadd.f32 %v759, %v851
    %v853 = vpop.f32.mrf.mxu0
    %v854 = vpop.f32.mrf.mxu0
    %v855 = vadd.f32 %v759, %v854
    %v856 = vpop.f32.mrf.mxu0
    %857 = vmatprep.mubr.bf16.mxu0 0
    %858 = vmatmul.mubr.bf16.gmra.mxu0 %v795
    %v859 = vpop.f32.mrf.mxu0
    %v860 = vadd.f32 %v759, %v859
    %v861 = vpop.f32.mrf.mxu0
    %v862 = vpop.f32.mrf.mxu0
    %v863 = vadd.f32 %v759, %v862
    %v864 = vpop.f32.mrf.mxu0
    %865 = vmatprep.mubr.bf16.mxu0 0
    %866 = vmatmul.mubr.bf16.gmra.mxu0 %v796
    %v867 = vpop.f32.mrf.mxu0
    %v868 = vadd.f32 %v759, %v867
    %v869 = vpop.f32.mrf.mxu0
    %v870 = vpop.f32.mrf.mxu0
    %v871 = vadd.f32 %v759, %v870
    %v872 = vpop.f32.mrf.mxu0
    %873 = vmatprep.mubr.bf16.mxu0 0
    %874 = vmatmul.mubr.bf16.gmra.mxu0 %v797
    %v875 = vpop.f32.mrf.mxu0
    %v876 = vadd.f32 %v759, %v875
    %v877 = vpop.f32.mrf.mxu0
    %v878 = vpop.f32.mrf.mxu0
    %v879 = vadd.f32 %v759, %v878
    %v880 = vpop.f32.mrf.mxu0
    %881 = vmatprep.mubr.bf16.mxu0 0
    %882 = vmatmul.mubr.bf16.gmra.mxu0 %v798
    %v883 = vpop.f32.mrf.mxu0
    %v884 = vadd.f32 %v759, %v883
    %v885 = vpop.f32.mrf.mxu0
    %v886 = vpop.f32.mrf.mxu0
    %v887 = vadd.f32 %v759, %v886
    %v888 = vpop.f32.mrf.mxu0
    %889 = vmatprep.mubr.bf16.mxu0 0
    %890 = vmatmul.mubr.bf16.gmra.mxu0 %v799
    %v891 = vpop.f32.mrf.mxu0
    %v892 = vadd.f32 %v759, %v891
    %v893 = vpop.f32.mrf.mxu0
    %v894 = vpop.f32.mrf.mxu0
    %v895 = vadd.f32 %v759, %v894
    %v896 = vpop.f32.mrf.mxu0
    %897 = vmatprep.mubr.bf16.mxu0 0
    %898 = vmatmul.mubr.bf16.gmra.mxu0 %v800
    %v899 = vpop.f32.mrf.mxu0
    %v900 = vadd.f32 %v759, %v899
    %v901 = vpop.f32.mrf.mxu0
    %v902 = vpop.f32.mrf.mxu0
    %v903 = vadd.f32 %v759, %v902
    %v904 = vpop.f32.mrf.mxu0
    %905 = vdwg.mxu0
    %906 = vst [vmem:[#allocation6] sm:$0xff] %v844
    %907 = vst [vmem:[#allocation6 + $0x8] sm:$0xff] %v847
    %908 = vst [vmem:[#allocation6 + $0x10] sm:$0xff] %v852
    %909 = vst [vmem:[#allocation6 + $0x18] sm:$0xff] %v855
    %910 = vst [vmem:[#allocation6 + $0x20] sm:$0xff] %v860
    %911 = vst [vmem:[#allocation6 + $0x28] sm:$0xff] %v863
    %912 = vst [vmem:[#allocation6 + $0x30] sm:$0xff] %v868
    %913 = vst [vmem:[#allocation6 + $0x38] sm:$0xff] %v871
    %914 = vst [vmem:[#allocation6 + $0x40] sm:$0xff] %v876
    %915 = vst [vmem:[#allocation6 + $0x48] sm:$0xff] %v879
    %916 = vst [vmem:[#allocation6 + $0x50] sm:$0xff] %v884
    %917 = vst [vmem:[#allocation6 + $0x58] sm:$0xff] %v887
    %918 = vst [vmem:[#allocation6 + $0x60] sm:$0xff] %v892
    %919 = vst [vmem:[#allocation6 + $0x68] sm:$0xff] %v895
    %920 = vst [vmem:[#allocation6 + $0x70] sm:$0xff] %v900
    %921 = vst [vmem:[#allocation6 + $0x78] sm:$0xff] %v903
    // Predicated region
    $region30: #{tpu_custom_call.1} parent=1 // pred_check
      _
    $region31: #{tpu_custom_call.1} parent=1 // pred_check_branch
      %923 = sbr.rel (0) target = $region33
    $region32: #{tpu_custom_call.1} parent=1 // pred_region
      %s925 = ssub.s32 2048, 2048
      %926 = vsyncadd [#allocation5], %s925
      %s927 = sshll.u32 [#allocation6], 4
      %s928 = int_to_ptr.vmem [resolvable:$true] %s927
      %933 = dma.vmem_to_hbm [thread:$0]  %s928, 2048, %s6, [#allocation5], 128, 128, 8
    $region33: #{tpu_custom_call.1} parent=1 // pred_fallthru
      _
    // Predicated region
    $region34: #{tpu_custom_call.1} parent=1 // pred_check
      _
    $region35: #{tpu_custom_call.1} parent=1 // pred_check_branch
      %935 = sbr.rel (0) target = $region37
    $region36: #{tpu_custom_call.1} parent=1 // pred_region
      %936 = dma.done [#allocation5], 2048
    $region37: #{tpu_custom_call.1} parent=1 // pred_fallthru
      _
    %937 = vsyncpa [#allocation4], 1
    %938 = vsyncpa [#allocation5], 1

</llo_original>
